<compile_context>
chip_gen: v7x
topology: tpu7x:2x2x1
jax: 0.10.0
libtpu: 0.0.40
codegen_flags: <defaults>
</compile_context>

<pallas_src>
import jax
import jax.numpy as jnp
from jax import lax
from jax.experimental import pallas as pl
from jax.experimental.pallas import tpu as pltpu

C_IN, C_OUT, K = 8, 10, 3
L_IN = 5                        # implied by Linear(10 * 3, 27): L_out = 3
L_OUT = L_IN - K + 1            # = 3
N_CLASSES = 27
N_PAD = 128                     # lane-dense padded output width
EPS = 1e-5


def classifier_kernel(x_ref, wt_ref, cb_ref, grp_ref, gamma_ref, beta_ref,
                      fcw_ref, fcb_ref, out_ref):
    """Fused conv1d (block-Toeplitz matmul) + training-mode BN + linear."""
    # Conv1d as a single MXU matmul: (B, 40) @ (40, 30) -> (B, 30); columns
    # are already in PyTorch flatten order (c * L_OUT + l).
    y = jnp.dot(x_ref[...], wt_ref[...],
                preferred_element_type=jnp.float32) + cb_ref[...]

    # BatchNorm1d (training-mode batch stats over batch and length, biased
    # variance).  grp_ref is a (30, 30) matrix so that (col_sums @ grp) is the
    # per-channel mean broadcast back over each channel's 3 positions.
    col_sum = jnp.sum(y, axis=0, keepdims=True)                      # (1, 30)
    mean = jnp.dot(col_sum, grp_ref[...],
                   preferred_element_type=jnp.float32)               # (1, 30)
    centered = y - mean
    var = jnp.dot(jnp.sum(centered * centered, axis=0, keepdims=True),
                  grp_ref[...], preferred_element_type=jnp.float32)  # (1, 30)
    scale = gamma_ref[...] * lax.rsqrt(var + EPS)
    bn = centered * scale + beta_ref[...]                            # (B, 30)

    # Flatten + Linear as one matmul into a lane-dense (B, 128) output
    # (columns >= 27 carry zero-padded weight/bias, sliced off outside).
    out_ref[...] = jnp.dot(bn, fcw_ref[...],
                           preferred_element_type=jnp.float32) + fcb_ref[...]


def _build_toeplitz(conv_w):
    """(C_OUT, C_IN, K) conv weight -> (C_IN*L_IN, C_OUT*L_OUT) matmul weight."""
    m = jnp.arange(L_IN)[None, :, None]
    l = jnp.arange(L_OUT)[None, None, :]
    k = jnp.arange(K)[:, None, None]
    shift = (m == l + k).astype(jnp.float32)                 # (K, L_IN, L_OUT)
    w4 = jnp.einsum("ock,kml->cmol", conv_w, shift)          # (C_IN,L_IN,C_OUT,L_OUT)
    return w4.reshape(C_IN * L_IN, C_OUT * L_OUT)


@jax.jit
def classifier_forward(x, conv_w, conv_b, gamma, beta, fc_w, fc_b):
    """x: (B, C_IN, L_IN) float32, NCL layout like PyTorch."""
    B = x.shape[0]

    # Contiguous view of x: x_flat[b, c*L_IN + m] = x[b, c, m]  (no im2col).
    x_flat = x.reshape(B, C_IN * L_IN).astype(jnp.float32)

    # Block-Toeplitz conv weight: one matmul does the whole Conv1d.
    w_toe = _build_toeplitz(conv_w.astype(jnp.float32))      # (40, 30)

    # Per-column (flattened) broadcast of channel-wise parameters.
    ch = jnp.arange(C_OUT * L_OUT) // L_OUT                  # column -> channel
    cb_col = conv_b[ch].reshape(1, C_OUT * L_OUT)
    gamma_col = gamma[ch].reshape(1, C_OUT * L_OUT)
    beta_col = beta[ch].reshape(1, C_OUT * L_OUT)

    # Group-average matrix for the BN batch statistics (embeds 1/(B*L_OUT)).
    grp = (ch[:, None] == ch[None, :]).astype(jnp.float32) / float(B * L_OUT)

    # FC weight in flatten order is just fc_w.T; zero-pad to 128 output lanes
    # so the kernel's final store is lane-dense.
    fcw = jnp.zeros((C_OUT * L_OUT, N_PAD), jnp.float32)
    fcw = fcw.at[:, :N_CLASSES].set(fc_w.T)
    fcb = jnp.zeros((1, N_PAD), jnp.float32).at[0, :N_CLASSES].set(fc_b)

    full = lambda shape: pl.BlockSpec(shape, lambda i: (0,) * len(shape))

    out_pad = pl.pallas_call(
        classifier_kernel,
        out_shape=jax.ShapeDtypeStruct((B, N_PAD), jnp.float32),
        grid=(1,),
        in_specs=[
            full(x_flat.shape),
            full(w_toe.shape),
            full(cb_col.shape),
            full(grp.shape),
            full(gamma_col.shape),
            full(beta_col.shape),
            full(fcw.shape),
            full(fcb.shape),
        ],
        out_specs=full((B, N_PAD)),
        compiler_params=pltpu.CompilerParams(
            dimension_semantics=("arbitrary",)),
    )(x_flat, w_toe, cb_col, grp, gamma_col, beta_col, fcw, fcb)

    return out_pad[:, :N_CLASSES]


def reference_forward(x, conv_w, conv_b, gamma, beta, fc_w, fc_b):
    """Pure-JAX reference mirroring the PyTorch forward (training-mode BN)."""
    conv = lax.conv_general_dilated(
        x, conv_w, window_strides=(1,), padding="VALID",
        dimension_numbers=("NCH", "OIH", "NCH")) + conv_b[None, :, None]
    mean = conv.mean(axis=(0, 2))
    var = conv.var(axis=(0, 2))          # biased, as PyTorch normalizes with
    bn = (conv - mean[None, :, None]) * lax.rsqrt(var + EPS)[None, :, None]
    bn = bn * gamma[None, :, None] + beta[None, :, None]
    flat = bn.reshape(x.shape[0], -1)    # PyTorch flatten of (B, 10, 3)
    return flat @ fc_w.T + fc_b[None, :]


if __name__ == "__main__":
    key = jax.random.PRNGKey(0)
    kx, k1, k2, k3, k4, k5, k6 = jax.random.split(key, 7)

    B = 2
    x = jax.random.normal(kx, (B, C_IN, L_IN), dtype=jnp.float32)

    # Deterministic synthetic parameters (shapes from the module __init__).
    conv_w = 0.1 * jax.random.normal(k1, (C_OUT, C_IN, K), dtype=jnp.float32)
    conv_b = 0.1 * jax.random.normal(k2, (C_OUT,), dtype=jnp.float32)
    gamma = 1.0 + 0.1 * jax.random.normal(k3, (C_OUT,), dtype=jnp.float32)
    beta = 0.1 * jax.random.normal(k4, (C_OUT,), dtype=jnp.float32)
    fc_w = 0.1 * jax.random.normal(k5, (N_CLASSES, C_OUT * L_OUT), dtype=jnp.float32)
    fc_b = 0.1 * jax.random.normal(k6, (N_CLASSES,), dtype=jnp.float32)

    out = classifier_forward(x, conv_w, conv_b, gamma, beta, fc_w, fc_b)
    out = jax.block_until_ready(out)

    ref = reference_forward(x, conv_w, conv_b, gamma, beta, fc_w, fc_b)
    assert out.shape == (B, N_CLASSES)
    assert jnp.allclose(out, ref, rtol=1e-3, atol=1e-4), \
        f"max abs err {jnp.max(jnp.abs(out - ref))}"

    print("KERNEL_OK")
</pallas_src>

<mosaic_0001>
module attributes {stable_mosaic.version = 11 : i64} {
  func.func @classifier_kernel(%arg0: i32, %arg1: memref<2x40xf32, #tpu.memory_space<vmem>>, %arg2: memref<40x30xf32, #tpu.memory_space<vmem>>, %arg3: memref<1x30xf32, #tpu.memory_space<vmem>>, %arg4: memref<30x30xf32, #tpu.memory_space<vmem>>, %arg5: memref<1x30xf32, #tpu.memory_space<vmem>>, %arg6: memref<1x30xf32, #tpu.memory_space<vmem>>, %arg7: memref<30x128xf32, #tpu.memory_space<vmem>>, %arg8: memref<1x128xf32, #tpu.memory_space<vmem>>, %arg9: memref<2x128xf32, #tpu.memory_space<vmem>>) attributes {dimension_semantics = [#tpu.dimension_semantics<arbitrary>], iteration_bounds = array<i64: 1>, scalar_prefetch = 0 : i64, scratch_operands = 0 : i64, tpu.core_type = #tpu.core_type<tc>, window_params = [{pipeline_mode = #tpu.pipeline_mode<synchronous>, transform_indices = @transform_0, window_bounds = array<i64: 2, 40>}, {pipeline_mode = #tpu.pipeline_mode<synchronous>, transform_indices = @transform_1, window_bounds = array<i64: 40, 30>}, {pipeline_mode = #tpu.pipeline_mode<synchronous>, transform_indices = @transform_2, window_bounds = array<i64: 1, 30>}, {pipeline_mode = #tpu.pipeline_mode<synchronous>, transform_indices = @transform_3, window_bounds = array<i64: 30, 30>}, {pipeline_mode = #tpu.pipeline_mode<synchronous>, transform_indices = @transform_4, window_bounds = array<i64: 1, 30>}, {pipeline_mode = #tpu.pipeline_mode<synchronous>, transform_indices = @transform_5, window_bounds = array<i64: 1, 30>}, {pipeline_mode = #tpu.pipeline_mode<synchronous>, transform_indices = @transform_6, window_bounds = array<i64: 30, 128>}, {pipeline_mode = #tpu.pipeline_mode<synchronous>, transform_indices = @transform_7, window_bounds = array<i64: 1, 128>}, {pipeline_mode = #tpu.pipeline_mode<synchronous>, transform_indices = @transform_8, window_bounds = array<i64: 2, 128>}]} {
    %c0 = arith.constant 0 : index
    %c0_0 = arith.constant 0 : index
    %0 = vector.load %arg1[%c0, %c0_0] : memref<2x40xf32, #tpu.memory_space<vmem>>, vector<2x40xf32>
    %c0_1 = arith.constant 0 : index
    %c0_2 = arith.constant 0 : index
    %1 = vector.load %arg2[%c0_1, %c0_2] : memref<40x30xf32, #tpu.memory_space<vmem>>, vector<40x30xf32>
    %cst = arith.constant dense<0.000000e+00> : vector<2x30xf32>
    %2 = tpu.matmul %0, %1, %cst {dimension_numbers = #tpu.dot_dimension_numbers<[1], [0], [0], [1], [0, 0, 1, 1], [], []>} : vector<2x40xf32>, vector<40x30xf32>, vector<2x30xf32> -> vector<2x30xf32>
    %c0_3 = arith.constant 0 : index
    %c0_4 = arith.constant 0 : index
    %3 = vector.load %arg3[%c0_3, %c0_4] : memref<1x30xf32, #tpu.memory_space<vmem>>, vector<1x30xf32>
    %4 = vector.broadcast %3 : vector<1x30xf32> to vector<2x30xf32>
    %5 = arith.addf %2, %4 : vector<2x30xf32>
    %cst_5 = arith.constant dense<0.000000e+00> : vector<30xf32>
    %6 = vector.multi_reduction <add>, %5, %cst_5 [0] : vector<2x30xf32> to vector<30xf32>
    %7 = vector.shape_cast %6 : vector<30xf32> to vector<1x30xf32>
    %c0_6 = arith.constant 0 : index
    %c0_7 = arith.constant 0 : index
    %8 = vector.load %arg4[%c0_6, %c0_7] : memref<30x30xf32, #tpu.memory_space<vmem>>, vector<30x30xf32>
    %cst_8 = arith.constant dense<0.000000e+00> : vector<1x30xf32>
    %9 = tpu.matmul %7, %8, %cst_8 {dimension_numbers = #tpu.dot_dimension_numbers<[1], [0], [0], [1], [0, 0, 1, 1], [], []>} : vector<1x30xf32>, vector<30x30xf32>, vector<1x30xf32> -> vector<1x30xf32>
    %10 = vector.broadcast %9 : vector<1x30xf32> to vector<2x30xf32>
    %11 = arith.subf %5, %10 : vector<2x30xf32>
    %12 = arith.mulf %11, %11 : vector<2x30xf32>
    %cst_9 = arith.constant dense<0.000000e+00> : vector<30xf32>
    %13 = vector.multi_reduction <add>, %12, %cst_9 [0] : vector<2x30xf32> to vector<30xf32>
    %14 = vector.shape_cast %13 : vector<30xf32> to vector<1x30xf32>
    %c0_10 = arith.constant 0 : index
    %c0_11 = arith.constant 0 : index
    %15 = vector.load %arg4[%c0_10, %c0_11] : memref<30x30xf32, #tpu.memory_space<vmem>>, vector<30x30xf32>
    %cst_12 = arith.constant dense<0.000000e+00> : vector<1x30xf32>
    %16 = tpu.matmul %14, %15, %cst_12 {dimension_numbers = #tpu.dot_dimension_numbers<[1], [0], [0], [1], [0, 0, 1, 1], [], []>} : vector<1x30xf32>, vector<30x30xf32>, vector<1x30xf32> -> vector<1x30xf32>
    %c0_13 = arith.constant 0 : index
    %c0_14 = arith.constant 0 : index
    %17 = vector.load %arg5[%c0_13, %c0_14] : memref<1x30xf32, #tpu.memory_space<vmem>>, vector<1x30xf32>
    %cst_15 = arith.constant 9.99999974E-6 : f32
    %18 = vector.broadcast %cst_15 : f32 to vector<1x30xf32>
    %19 = arith.addf %16, %18 : vector<1x30xf32>
    %20 = math.rsqrt %19 : vector<1x30xf32>
    %21 = arith.mulf %17, %20 : vector<1x30xf32>
    %22 = vector.broadcast %21 : vector<1x30xf32> to vector<2x30xf32>
    %23 = arith.mulf %11, %22 : vector<2x30xf32>
    %c0_16 = arith.constant 0 : index
    %c0_17 = arith.constant 0 : index
    %24 = vector.load %arg6[%c0_16, %c0_17] : memref<1x30xf32, #tpu.memory_space<vmem>>, vector<1x30xf32>
    %25 = vector.broadcast %24 : vector<1x30xf32> to vector<2x30xf32>
    %26 = arith.addf %23, %25 : vector<2x30xf32>
    %c0_18 = arith.constant 0 : index
    %c0_19 = arith.constant 0 : index
    %27 = vector.load %arg7[%c0_18, %c0_19] : memref<30x128xf32, #tpu.memory_space<vmem>>, vector<30x128xf32>
    %cst_20 = arith.constant dense<0.000000e+00> : vector<2x128xf32>
    %28 = tpu.matmul %26, %27, %cst_20 {dimension_numbers = #tpu.dot_dimension_numbers<[1], [0], [0], [1], [0, 0, 1, 1], [], []>} : vector<2x30xf32>, vector<30x128xf32>, vector<2x128xf32> -> vector<2x128xf32>
    %c0_21 = arith.constant 0 : index
    %c0_22 = arith.constant 0 : index
    %29 = vector.load %arg8[%c0_21, %c0_22] : memref<1x128xf32, #tpu.memory_space<vmem>>, vector<1x128xf32>
    %30 = vector.broadcast %29 : vector<1x128xf32> to vector<2x128xf32>
    %31 = arith.addf %28, %30 : vector<2x128xf32>
    %c0_23 = arith.constant 0 : index
    %c0_24 = arith.constant 0 : index
    %32 = vector.load %arg9[%c0_23, %c0_24] : memref<2x128xf32, #tpu.memory_space<vmem>>, vector<2x128xf32>
    tpu.vector_store %arg9[%c0_23, %c0_24], %31 {strides = array<i32>} : memref<2x128xf32, #tpu.memory_space<vmem>>, vector<2x128xf32>,
    return
  }
  func.func @transform_0(%arg0: i32) -> (i32, i32) {
    %c0_i32 = arith.constant 0 : i32
    %c0_i32_0 = arith.constant 0 : i32
    %c0_i32_1 = arith.constant 0 : i32
    return %c0_i32, %c0_i32_0 : i32, i32
  }
  func.func @transform_1(%arg0: i32) -> (i32, i32) {
    %c0_i32 = arith.constant 0 : i32
    %c0_i32_0 = arith.constant 0 : i32
    %c0_i32_1 = arith.constant 0 : i32
    return %c0_i32, %c0_i32_0 : i32, i32
  }
  func.func @transform_2(%arg0: i32) -> (i32, i32) {
    %c0_i32 = arith.constant 0 : i32
    %c0_i32_0 = arith.constant 0 : i32
    %c0_i32_1 = arith.constant 0 : i32
    return %c0_i32, %c0_i32_0 : i32, i32
  }
  func.func @transform_3(%arg0: i32) -> (i32, i32) {
    %c0_i32 = arith.constant 0 : i32
    %c0_i32_0 = arith.constant 0 : i32
    %c0_i32_1 = arith.constant 0 : i32
    return %c0_i32, %c0_i32_0 : i32, i32
  }
  func.func @transform_4(%arg0: i32) -> (i32, i32) {
    %c0_i32 = arith.constant 0 : i32
    %c0_i32_0 = arith.constant 0 : i32
    %c0_i32_1 = arith.constant 0 : i32
    return %c0_i32, %c0_i32_0 : i32, i32
  }
  func.func @transform_5(%arg0: i32) -> (i32, i32) {
    %c0_i32 = arith.constant 0 : i32
    %c0_i32_0 = arith.constant 0 : i32
    %c0_i32_1 = arith.constant 0 : i32
    return %c0_i32, %c0_i32_0 : i32, i32
  }
  func.func @transform_6(%arg0: i32) -> (i32, i32) {
    %c0_i32 = arith.constant 0 : i32
    %c0_i32_0 = arith.constant 0 : i32
    %c0_i32_1 = arith.constant 0 : i32
    return %c0_i32, %c0_i32_0 : i32, i32
  }
  func.func @transform_7(%arg0: i32) -> (i32, i32) {
    %c0_i32 = arith.constant 0 : i32
    %c0_i32_0 = arith.constant 0 : i32
    %c0_i32_1 = arith.constant 0 : i32
    return %c0_i32, %c0_i32_0 : i32, i32
  }
  func.func @transform_8(%arg0: i32) -> (i32, i32) {
    %c0_i32 = arith.constant 0 : i32
    %c0_i32_0 = arith.constant 0 : i32
    %c0_i32_1 = arith.constant 0 : i32
    return %c0_i32, %c0_i32_0 : i32, i32
  }
}

</mosaic_0001>

<llo_original>
// kernel: classifier_forward.1
$region0: #{classifier_forward.1}
  #allocation0 [shape = 'u32[]', space=smem, size = 0x4, offset = 0x4, fixed_abs, tag = 'smem constant byte address 0x4 - core index']
  #allocation1 [shape = 'u32[144,128]{1,0:T(1,128)}', space=vmem, size = 0x12000, scoped, tag = 'internal scratch']
  %s0 = inlined_call_operand.vmem [shape: f32[2,40], index: 0, kind: input, shape index: {}]
  %s1 = inlined_call_operand.vmem [shape: f32[40,30], index: 1, kind: input, shape index: {}]
  %s2 = inlined_call_operand.vmem [shape: f32[1,30], index: 2, kind: input, shape index: {}]
  %s3 = inlined_call_operand.vmem [shape: f32[30,30], index: 3, kind: input, shape index: {}]
  %s4 = inlined_call_operand.vmem [shape: f32[1,30], index: 4, kind: input, shape index: {}]
  %s5 = inlined_call_operand.vmem [shape: f32[1,30], index: 5, kind: input, shape index: {}]
  %s6 = inlined_call_operand.vmem [shape: f32[30,128], index: 6, kind: input, shape index: {}]
  %s7 = inlined_call_operand.vmem [shape: f32[1,128], index: 7, kind: input, shape index: {}]
  %s8 = inlined_call_operand.hbm [shape: f32[2,128], index: 8, kind: output, shape index: {}]
  %s9 = sld [smem:[#allocation0]]
  $region42: #{classifier_forward.1} parent=0
    _
  %s11 = ssub.s32 1, %s9
  %s12 = scalar_select 0, %s11, %s9
  $region1: #{classifier_forward.1} parent=0
    #allocation2 [shape = 'u8[1024]{0}', space=vmem, size = 0x400, scoped, tag = 'output window, operand 0, single buffered']
    #allocation3 [shape = 's32[1]{0}', space=sflag, size = 0x4, scoped, tag = 'scoped memory for classifier_forward.1']
    %13 = vsyncpa [#allocation3], 0
    // Predicated region
    $region2: #{classifier_forward.1} parent=1 // pred_check
      _
    $region3: #{classifier_forward.1} parent=1 // pred_check_branch
      %15 = sbr.rel (0) target = $region5
    $region4: #{classifier_forward.1} parent=1 // pred_region
      _
    $region5: #{classifier_forward.1} parent=1 // pred_fallthru
      _
    // Predicated region
    $region6: #{classifier_forward.1} parent=1 // pred_check
      _
    $region7: #{classifier_forward.1} parent=1 // pred_check_branch
      %17 = sbr.rel (0) target = $region9
    $region8: #{classifier_forward.1} parent=1 // pred_region
      _
    $region9: #{classifier_forward.1} parent=1 // pred_fallthru
      _
    // Predicated region
    $region10: #{classifier_forward.1} parent=1 // pred_check
      _
    $region11: #{classifier_forward.1} parent=1 // pred_check_branch
      %19 = sbr.rel (0) target = $region13
    $region12: #{classifier_forward.1} parent=1 // pred_region
      _
    $region13: #{classifier_forward.1} parent=1 // pred_fallthru
      _
    // Predicated region
    $region14: #{classifier_forward.1} parent=1 // pred_check
      _
    $region15: #{classifier_forward.1} parent=1 // pred_check_branch
      %21 = sbr.rel (0) target = $region17
    $region16: #{classifier_forward.1} parent=1 // pred_region
      _
    $region17: #{classifier_forward.1} parent=1 // pred_fallthru
      _
    // Predicated region
    $region18: #{classifier_forward.1} parent=1 // pred_check
      _
    $region19: #{classifier_forward.1} parent=1 // pred_check_branch
      %23 = sbr.rel (0) target = $region21
    $region20: #{classifier_forward.1} parent=1 // pred_region
      _
    $region21: #{classifier_forward.1} parent=1 // pred_fallthru
      _
    // Predicated region
    $region22: #{classifier_forward.1} parent=1 // pred_check
      _
    $region23: #{classifier_forward.1} parent=1 // pred_check_branch
      %25 = sbr.rel (0) target = $region25
    $region24: #{classifier_forward.1} parent=1 // pred_region
      _
    $region25: #{classifier_forward.1} parent=1 // pred_fallthru
      _
    // Predicated region
    $region26: #{classifier_forward.1} parent=1 // pred_check
      _
    $region27: #{classifier_forward.1} parent=1 // pred_check_branch
      %27 = sbr.rel (0) target = $region29
    $region28: #{classifier_forward.1} parent=1 // pred_region
      _
    $region29: #{classifier_forward.1} parent=1 // pred_fallthru
      _
    // Predicated region
    $region30: #{classifier_forward.1} parent=1 // pred_check
      _
    $region31: #{classifier_forward.1} parent=1 // pred_check_branch
      %29 = sbr.rel (0) target = $region33
    $region32: #{classifier_forward.1} parent=1 // pred_region
      _
    $region33: #{classifier_forward.1} parent=1 // pred_fallthru
      _
    %v30 = vld [vmem:[%s0] sm:$0x3]
    %v31 = vld [vmem:[%s1] sm:$0xff]
    %v32 = vld [vmem:[%s1 + $0x8] sm:$0xff]
    %v33 = vld [vmem:[%s1 + $0x10] sm:$0xff]
    %v34 = vld [vmem:[%s1 + $0x18] sm:$0xff]
    %v35 = vld [vmem:[%s1 + $0x20] sm:$0xff]
    %v36 = vld [vmem:[%s2] sm:$0x1]
    %v38 = vlaneseq
    %v39 = vshrl.u32 %v38, 7
    %v40 = vsub.s32 0, %v39
    %v41 = vrot.slane %v36, %v40
    %vm43 = vcmask 326656
    %v45 = vsel %vm43, %v30, 0
    %47 = vmatprep.subr.mxu0 0.0
    %48 = vmatpush1.msra.mxu0 %v31
    %49 = vmatprep.subr.mxu0 0.0
    %50 = vmatpush1.msra.mxu0 %v32
    %51 = vmatprep.subr.mxu0 0.0
    %52 = vmatpush1.msra.mxu0 %v33
    %53 = vmatprep.subr.mxu0 0.0
    %54 = vmatpush1.msra.mxu0 %v34
    %55 = vmatprep.subr.mxu0 0.0
    %56 = vmatpush1.msra.mxu0 %v35
    %57 = vmatprep.subr.mxu0 0.0
    %58 = vmatpush1.msra.mxu0 0.0
    %59 = vmatprep.subr.mxu0 0.0
    %60 = vmatpush1.msra.mxu0 0.0
    %61 = vmatprep.subr.mxu0 0.0
    %62 = vmatpush1.msra.mxu0 0.0
    %63 = vmatprep.subr.mxu0 0.0
    %64 = vmatpush1.msra.mxu0 0.0
    %65 = vmatprep.subr.mxu0 0.0
    %66 = vmatpush1.msra.mxu0 0.0
    %67 = vmatprep.subr.mxu0 0.0
    %68 = vmatpush1.msra.mxu0 0.0
    %69 = vmatprep.subr.mxu0 0.0
    %70 = vmatpush1.msra.mxu0 0.0
    %71 = vmatprep.subr.mxu0 0.0
    %72 = vmatpush1.msra.mxu0 0.0
    %73 = vmatprep.subr.mxu0 0.0
    %74 = vmatpush1.msra.mxu0 0.0
    %75 = vmatprep.subr.mxu0 0.0
    %76 = vmatpush1.msra.mxu0 0.0
    %77 = vmatprep.subr.mxu0 0.0
    %78 = vmatpush1.msra.mxu0 0.0
    %79 = vmatprep.subr.mxu0 0.0
    %80 = vmatpush1.msra.mxu0 0.0
    %81 = vmatprep.subr.mxu0 0.0
    %82 = vmatpush1.msra.mxu0 0.0
    %83 = vmatprep.subr.mxu0 0.0
    %84 = vmatpush1.msra.mxu0 0.0
    %85 = vmatprep.subr.mxu0 0.0
    %86 = vmatpush1.msra.mxu0 0.0
    %87 = vmatprep.subr.mxu0 0.0
    %88 = vmatpush1.msra.mxu0 0.0
    %89 = vmatprep.subr.mxu0 0.0
    %90 = vmatpush1.msra.mxu0 0.0
    %91 = vmatprep.subr.mxu0 0.0
    %92 = vmatpush1.msra.mxu0 0.0
    %93 = vmatprep.subr.mxu0 0.0
    %94 = vmatpush1.msra.mxu0 0.0
    %95 = vmatprep.subr.mxu0 0.0
    %96 = vmatpush1.msra.mxu0 0.0
    %97 = vmatprep.subr.mxu0 0.0
    %98 = vmatpush1.msra.mxu0 0.0
    %99 = vmatprep.subr.mxu0 0.0
    %100 = vmatpush1.msra.mxu0 0.0
    %101 = vmatprep.subr.mxu0 0.0
    %102 = vmatpush1.msra.mxu0 0.0
    %103 = vmatprep.subr.mxu0 0.0
    %104 = vmatpush1.msra.mxu0 0.0
    %105 = vmatprep.subr.mxu0 0.0
    %106 = vmatpush1.msra.mxu0 0.0
    %107 = vmatprep.subr.mxu0 0.0
    %108 = vmatpush1.msra.mxu0 0.0
    %109 = vmatprep.subr.mxu0 0.0
    %110 = vmatpush1.msra.mxu0 0.0
    %111 = vmatprep.mubr.f32.mxu0 0.0
    %112 = vmatmul.mubr.f32.gmra.mrb[0].mxu0 %v45
    %v113 = vpop.f32.mrb[0].mxu0
    %v114 = vadd.f32 %v41, %v113
    %v115 = vpop.f32.mrb[0].mxu0
    %116 = vdwg.mxu0
    %vm117 = vcmask 238592
    %v118 = vsel %vm117, %v114, 0.0
    %v119 = vrot.slane %v118, 4
    %v120 = vadd.f32 %v118, %v119
    %v121 = vrot.slane %v120, 2
    %v122 = vadd.f32 %v120, %v121
    %v123 = vrot.slane %v122, 1
    %v124 = vadd.f32 %v122, %v123
    %v125 = vld [vmem:[%s3] sm:$0xff]
    %v126 = vld [vmem:[%s3 + $0x8] sm:$0xff]
    %v127 = vld [vmem:[%s3 + $0x10] sm:$0xff]
    %v128 = vld [vmem:[%s3 + $0x18] sm:$0x3f]
    %vm129 = vcmask 244736
    %v131 = vsel %vm129, %v124, 0
    %vm133 = vcmask 1045504
    %v135 = vsel %vm133, %v128, 0
    %137 = vmatprep.subr.mxu0 0.0
    %138 = vmatpush1.msra.mxu0 %v125
    %139 = vmatprep.subr.mxu0 0.0
    %140 = vmatpush1.msra.mxu0 %v126
    %141 = vmatprep.subr.mxu0 0.0
    %142 = vmatpush1.msra.mxu0 %v127
    %143 = vmatprep.subr.mxu0 0.0
    %144 = vmatpush1.msra.mxu0 %v135
    %145 = vmatprep.subr.mxu0 0.0
    %146 = vmatpush1.msra.mxu0 0.0
    %147 = vmatprep.subr.mxu0 0.0
    %148 = vmatpush1.msra.mxu0 0.0
    %149 = vmatprep.subr.mxu0 0.0
    %150 = vmatpush1.msra.mxu0 0.0
    %151 = vmatprep.subr.mxu0 0.0
    %152 = vmatpush1.msra.mxu0 0.0
    %153 = vmatprep.subr.mxu0 0.0
    %154 = vmatpush1.msra.mxu0 0.0
    %155 = vmatprep.subr.mxu0 0.0
    %156 = vmatpush1.msra.mxu0 0.0
    %157 = vmatprep.subr.mxu0 0.0
    %158 = vmatpush1.msra.mxu0 0.0
    %159 = vmatprep.subr.mxu0 0.0
    %160 = vmatpush1.msra.mxu0 0.0
    %161 = vmatprep.subr.mxu0 0.0
    %162 = vmatpush1.msra.mxu0 0.0
    %163 = vmatprep.subr.mxu0 0.0
    %164 = vmatpush1.msra.mxu0 0.0
    %165 = vmatprep.subr.mxu0 0.0
    %166 = vmatpush1.msra.mxu0 0.0
    %167 = vmatprep.subr.mxu0 0.0
    %168 = vmatpush1.msra.mxu0 0.0
    %169 = vmatprep.subr.mxu0 0.0
    %170 = vmatpush1.msra.mxu0 0.0
    %171 = vmatprep.subr.mxu0 0.0
    %172 = vmatpush1.msra.mxu0 0.0
    %173 = vmatprep.subr.mxu0 0.0
    %174 = vmatpush1.msra.mxu0 0.0
    %175 = vmatprep.subr.mxu0 0.0
    %176 = vmatpush1.msra.mxu0 0.0
    %177 = vmatprep.subr.mxu0 0.0
    %178 = vmatpush1.msra.mxu0 0.0
    %179 = vmatprep.subr.mxu0 0.0
    %180 = vmatpush1.msra.mxu0 0.0
    %181 = vmatprep.subr.mxu0 0.0
    %182 = vmatpush1.msra.mxu0 0.0
    %183 = vmatprep.subr.mxu0 0.0
    %184 = vmatpush1.msra.mxu0 0.0
    %185 = vmatprep.subr.mxu0 0.0
    %186 = vmatpush1.msra.mxu0 0.0
    %187 = vmatprep.subr.mxu0 0.0
    %188 = vmatpush1.msra.mxu0 0.0
    %189 = vmatprep.subr.mxu0 0.0
    %190 = vmatpush1.msra.mxu0 0.0
    %191 = vmatprep.subr.mxu0 0.0
    %192 = vmatpush1.msra.mxu0 0.0
    %193 = vmatprep.subr.mxu0 0.0
    %194 = vmatpush1.msra.mxu0 0.0
    %195 = vmatprep.subr.mxu0 0.0
    %196 = vmatpush1.msra.mxu0 0.0
    %197 = vmatprep.subr.mxu0 0.0
    %198 = vmatpush1.msra.mxu0 0.0
    %199 = vmatprep.subr.mxu0 0.0
    %200 = vmatpush1.msra.mxu0 0.0
    %201 = vmatprep.mubr.f32.mxu0 0.0
    %202 = vmatmul.mubr.f32.gmra.mrb[0].mxu0 %v131
    %v203 = vpop.f32.mrb[0].mxu0
    %v204 = vadd.f32 0.0, %v203
    %v205 = vpop.f32.mrb[0].mxu0
    %206 = vdwg.mxu0
    %v207 = vlaneseq
    %v208 = vshrl.u32 %v207, 7
    %v209 = vsub.s32 0, %v208
    %v210 = vrot.slane %v204, %v209
    %v211 = vsub.f32 %v114, %v210
    %v212 = vmul.f32 %v211, %v211
    %v213 = vsel %vm117, %v212, 0.0
    %v214 = vrot.slane %v213, 4
    %v215 = vadd.f32 %v213, %v214
    %v216 = vrot.slane %v215, 2
    %v217 = vadd.f32 %v215, %v216
    %v218 = vrot.slane %v217, 1
    %v219 = vadd.f32 %v217, %v218
    %v220 = vld [vmem:[%s4] sm:$0x1]
    %v222 = vsel %vm129, %v219, 0
    %224 = vmatprep.subr.mxu0 0.0
    %225 = vmatpush1.msra.mxu0 %v125
    %226 = vmatprep.subr.mxu0 0.0
    %227 = vmatpush1.msra.mxu0 %v126
    %228 = vmatprep.subr.mxu0 0.0
    %229 = vmatpush1.msra.mxu0 %v127
    %230 = vmatprep.subr.mxu0 0.0
    %231 = vmatpush1.msra.mxu0 %v135
    %232 = vmatprep.subr.mxu0 0.0
    %233 = vmatpush1.msra.mxu0 0.0
    %234 = vmatprep.subr.mxu0 0.0
    %235 = vmatpush1.msra.mxu0 0.0
    %236 = vmatprep.subr.mxu0 0.0
    %237 = vmatpush1.msra.mxu0 0.0
    %238 = vmatprep.subr.mxu0 0.0
    %239 = vmatpush1.msra.mxu0 0.0
    %240 = vmatprep.subr.mxu0 0.0
    %241 = vmatpush1.msra.mxu0 0.0
    %242 = vmatprep.subr.mxu0 0.0
    %243 = vmatpush1.msra.mxu0 0.0
    %244 = vmatprep.subr.mxu0 0.0
    %245 = vmatpush1.msra.mxu0 0.0
    %246 = vmatprep.subr.mxu0 0.0
    %247 = vmatpush1.msra.mxu0 0.0
    %248 = vmatprep.subr.mxu0 0.0
    %249 = vmatpush1.msra.mxu0 0.0
    %250 = vmatprep.subr.mxu0 0.0
    %251 = vmatpush1.msra.mxu0 0.0
    %252 = vmatprep.subr.mxu0 0.0
    %253 = vmatpush1.msra.mxu0 0.0
    %254 = vmatprep.subr.mxu0 0.0
    %255 = vmatpush1.msra.mxu0 0.0
    %256 = vmatprep.subr.mxu0 0.0
    %257 = vmatpush1.msra.mxu0 0.0
    %258 = vmatprep.subr.mxu0 0.0
    %259 = vmatpush1.msra.mxu0 0.0
    %260 = vmatprep.subr.mxu0 0.0
    %261 = vmatpush1.msra.mxu0 0.0
    %262 = vmatprep.subr.mxu0 0.0
    %263 = vmatpush1.msra.mxu0 0.0
    %264 = vmatprep.subr.mxu0 0.0
    %265 = vmatpush1.msra.mxu0 0.0
    %266 = vmatprep.subr.mxu0 0.0
    %267 = vmatpush1.msra.mxu0 0.0
    %268 = vmatprep.subr.mxu0 0.0
    %269 = vmatpush1.msra.mxu0 0.0
    %270 = vmatprep.subr.mxu0 0.0
    %271 = vmatpush1.msra.mxu0 0.0
    %272 = vmatprep.subr.mxu0 0.0
    %273 = vmatpush1.msra.mxu0 0.0
    %274 = vmatprep.subr.mxu0 0.0
    %275 = vmatpush1.msra.mxu0 0.0
    %276 = vmatprep.subr.mxu0 0.0
    %277 = vmatpush1.msra.mxu0 0.0
    %278 = vmatprep.subr.mxu0 0.0
    %279 = vmatpush1.msra.mxu0 0.0
    %280 = vmatprep.subr.mxu0 0.0
    %281 = vmatpush1.msra.mxu0 0.0
    %282 = vmatprep.subr.mxu0 0.0
    %283 = vmatpush1.msra.mxu0 0.0
    %284 = vmatprep.subr.mxu0 0.0
    %285 = vmatpush1.msra.mxu0 0.0
    %286 = vmatprep.subr.mxu0 0.0
    %287 = vmatpush1.msra.mxu0 0.0
    %288 = vmatprep.mubr.f32.mxu0 0.0
    %289 = vmatmul.mubr.f32.gmra.mrb[0].mxu0 %v222
    %v290 = vpop.f32.mrb[0].mxu0
    %v291 = vadd.f32 1e-05, %v290
    %v292 = vpop.f32.mrb[0].mxu0
    %293 = vdwg.mxu0
    %v294 = vrsqrt.pop %v291
    %v295 = vmul.f32 %v220, %v294
    %v297 = vlaneseq
    %v298 = vshrl.u32 %v297, 7
    %v299 = vsub.s32 0, %v298
    %v300 = vrot.slane %v295, %v299
    %v302 = vmul.f32 %v211, %v300
    %v303 = vld [vmem:[%s5] sm:$0x1]
    %v305 = vlaneseq
    %v306 = vshrl.u32 %v305, 7
    %v307 = vsub.s32 0, %v306
    %v308 = vrot.slane %v303, %v307
    %v310 = vadd.f32 %v302, %v308
    %v311 = vld [vmem:[%s6] sm:$0xff]
    %v312 = vld [vmem:[%s6 + $0x8] sm:$0xff]
    %v313 = vld [vmem:[%s6 + $0x10] sm:$0xff]
    %v314 = vld [vmem:[%s6 + $0x18] sm:$0x3f]
    %v315 = vld [vmem:[%s7] sm:$0x1]
    %v317 = vlaneseq
    %v318 = vshrl.u32 %v317, 7
    %v319 = vsub.s32 0, %v318
    %v320 = vrot.slane %v315, %v319
    %v323 = vsel %vm129, %v310, 0
    %v326 = vsel %vm133, %v314, 0
    %328 = vmatprep.subr.mxu0 0.0
    %329 = vmatpush1.msra.mxu0 %v311
    %330 = vmatprep.subr.mxu0 0.0
    %331 = vmatpush1.msra.mxu0 %v312
    %332 = vmatprep.subr.mxu0 0.0
    %333 = vmatpush1.msra.mxu0 %v313
    %334 = vmatprep.subr.mxu0 0.0
    %335 = vmatpush1.msra.mxu0 %v326
    %336 = vmatprep.subr.mxu0 0.0
    %337 = vmatpush1.msra.mxu0 0.0
    %338 = vmatprep.subr.mxu0 0.0
    %339 = vmatpush1.msra.mxu0 0.0
    %340 = vmatprep.subr.mxu0 0.0
    %341 = vmatpush1.msra.mxu0 0.0
    %342 = vmatprep.subr.mxu0 0.0
    %343 = vmatpush1.msra.mxu0 0.0
    %344 = vmatprep.subr.mxu0 0.0
    %345 = vmatpush1.msra.mxu0 0.0
    %346 = vmatprep.subr.mxu0 0.0
    %347 = vmatpush1.msra.mxu0 0.0
    %348 = vmatprep.subr.mxu0 0.0
    %349 = vmatpush1.msra.mxu0 0.0
    %350 = vmatprep.subr.mxu0 0.0
    %351 = vmatpush1.msra.mxu0 0.0
    %352 = vmatprep.subr.mxu0 0.0
    %353 = vmatpush1.msra.mxu0 0.0
    %354 = vmatprep.subr.mxu0 0.0
    %355 = vmatpush1.msra.mxu0 0.0
    %356 = vmatprep.subr.mxu0 0.0
    %357 = vmatpush1.msra.mxu0 0.0
    %358 = vmatprep.subr.mxu0 0.0
    %359 = vmatpush1.msra.mxu0 0.0
    %360 = vmatprep.subr.mxu0 0.0
    %361 = vmatpush1.msra.mxu0 0.0
    %362 = vmatprep.subr.mxu0 0.0
    %363 = vmatpush1.msra.mxu0 0.0
    %364 = vmatprep.subr.mxu0 0.0
    %365 = vmatpush1.msra.mxu0 0.0
    %366 = vmatprep.subr.mxu0 0.0
    %367 = vmatpush1.msra.mxu0 0.0
    %368 = vmatprep.subr.mxu0 0.0
    %369 = vmatpush1.msra.mxu0 0.0
    %370 = vmatprep.subr.mxu0 0.0
    %371 = vmatpush1.msra.mxu0 0.0
    %372 = vmatprep.subr.mxu0 0.0
    %373 = vmatpush1.msra.mxu0 0.0
    %374 = vmatprep.subr.mxu0 0.0
    %375 = vmatpush1.msra.mxu0 0.0
    %376 = vmatprep.subr.mxu0 0.0
    %377 = vmatpush1.msra.mxu0 0.0
    %378 = vmatprep.subr.mxu0 0.0
    %379 = vmatpush1.msra.mxu0 0.0
    %380 = vmatprep.subr.mxu0 0.0
    %381 = vmatpush1.msra.mxu0 0.0
    %382 = vmatprep.subr.mxu0 0.0
    %383 = vmatpush1.msra.mxu0 0.0
    %384 = vmatprep.subr.mxu0 0.0
    %385 = vmatpush1.msra.mxu0 0.0
    %386 = vmatprep.subr.mxu0 0.0
    %387 = vmatpush1.msra.mxu0 0.0
    %388 = vmatprep.subr.mxu0 0.0
    %389 = vmatpush1.msra.mxu0 0.0
    %390 = vmatprep.subr.mxu0 0.0
    %391 = vmatpush1.msra.mxu0 0.0
    %392 = vmatprep.mubr.f32.mxu0 0.0
    %393 = vmatmul.mubr.f32.gmra.mrb[0].mxu0 %v323
    %v394 = vpop.f32.mrb[0].mxu0
    %v395 = vadd.f32 %v320, %v394
    %v396 = vpop.f32.mrb[0].mxu0
    %397 = vdwg.mxu0
    %398 = vst [vmem:[#allocation2] sm:$0x3] %v395
    // Predicated region
    $region34: #{classifier_forward.1} parent=1 // pred_check
      _
    $region35: #{classifier_forward.1} parent=1 // pred_check_branch
      %400 = sbr.rel (0) target = $region37
    $region36: #{classifier_forward.1} parent=1 // pred_region
      %s402 = ssub.s32 32, 32
      %403 = vsyncadd [#allocation3], %s402
      %s405 = sshll.u32 [#allocation2], 4
      %s406 = int_to_ptr.vmem [resolvable:$true] %s405
      %408 = dma.vmem_to_hbm [thread:$0]  %s406, 32, %s8, [#allocation3]
    $region37: #{classifier_forward.1} parent=1 // pred_fallthru
      _
    // Predicated region
    $region38: #{classifier_forward.1} parent=1 // pred_check
      _
    $region39: #{classifier_forward.1} parent=1 // pred_check_branch
      %410 = sbr.rel (0) target = $region41
    $region40: #{classifier_forward.1} parent=1 // pred_region
      %411 = dma.done [#allocation3], 32
    $region41: #{classifier_forward.1} parent=1 // pred_fallthru
      _
    %412 = vsyncpa [#allocation3], 1

</llo_original>
